<compile_context>
chip_gen: v5e
topology: v5e:2x2
jax: 0.10.0
libtpu: 0.0.40
codegen_flags: <defaults>
</compile_context>

<pallas_src>
import jax
import jax.numpy as jnp
from jax.experimental import pallas as pl
from jax.experimental.pallas import tpu as pltpu

_LANE = 128
_SUBLANE_F32 = 8
_TARGET_BLOCK_BYTES = 4 * 1024 * 1024     # ~4 MiB per pipeline buffer
_MIN_GRID_STEPS = 4                       # keep both v7x TensorCores busy
_MIN_BYTES_FOR_SPLIT = 1 * 1024 * 1024    # don't force-split truly tiny inputs


def _round_down(x, m):
    return (x // m) * m


def _cdl_kernel(flag_ref, s_ref, b_ref, p_ref, x_ref, o_ref):
    """One lane-dense tile.  s/b/p broadcast against x along rows or lanes."""
    s = s_ref[...]
    b = b_ref[...]
    p = p_ref[...]
    # slope is pre-clamped (>= 1e-8); clamp the affine result to > 0.
    y = jnp.maximum(x_ref[...] * s + b, 1e-11)

    fast = flag_ref[0] == 1       # all powers exactly 1.0 -> pow is identity

    @pl.when(fast)
    def _():
        o_ref[...] = y.astype(o_ref.dtype)

    @pl.when(jnp.logical_not(fast))
    def _():
        # y > 0 (clamped), so pow(y, p) == exp(p * log(y)).
        o_ref[...] = jnp.exp(p * jnp.log(y)).astype(o_ref.dtype)


def cdl_forward(x, slope, offset, power):
    """CDL forward.  x: (N, C, H, W); slope/offset/power: (1, C, 1, 1)."""
    N, C, H, W = x.shape
    M = H * W
    itemsize = jnp.dtype(x.dtype).itemsize
    sub = _SUBLANE_F32 * max(1, 4 // itemsize)       # 8 f32 / 16 bf16 / 32 int8
    elems_budget = max(_LANE, _TARGET_BLOCK_BYTES // max(itemsize, 4))

    # Per-channel parameters (f32 compute).
    s_c = jnp.maximum(slope.reshape(C), 1e-8).astype(jnp.float32)
    b_c = offset.reshape(C).astype(jnp.float32)
    p_c = power.reshape(C).astype(jnp.float32)

    # Single scalar fast-path flag, read from SMEM inside the kernel.
    flag = jnp.all(power.reshape(-1) == 1.0).astype(jnp.int32).reshape(1)

    total_bytes = N * C * M * itemsize
    want_split = total_bytes >= _MIN_BYTES_FOR_SPLIT

    if M >= _LANE:
        # ---------- lane-dense (N*C, H*W) slab ----------
        NC = N * C
        x2 = x.reshape(NC, M)
        s_row = jnp.broadcast_to(s_c[None, :], (N, C)).reshape(NC, 1)
        b_row = jnp.broadcast_to(b_c[None, :], (N, C)).reshape(NC, 1)
        p_row = jnp.broadcast_to(p_c[None, :], (N, C)).reshape(NC, 1)

        # Tile selection: wide lane axis first (contiguous DMA), thin rows.
        if M <= elems_budget:
            TW = M                                   # full rows are contiguous
            rows = max(1, elems_budget // M)
            if NC <= sub or NC <= rows:
                TR = NC                              # full extent (always legal)
            else:
                TR = max(sub, _round_down(rows, sub))
        else:
            TR = NC if NC <= sub else sub
            TW = max(_LANE, _round_down(elems_budget // TR, _LANE))

        # Guarantee a few grid steps on non-tiny inputs (v7x has 2 TCs).
        def _steps(tr, tw):
            return ((NC + tr - 1) // tr) * ((M + tw - 1) // tw)

        tries = 0
        while want_split and _steps(TR, TW) < _MIN_GRID_STEPS and tries < 8:
            tries += 1
            if TR >= 2 * sub:
                TR = max(sub, _round_down(TR // 2, sub))
            elif TW >= 2 * _LANE:
                TW = max(_LANE, _round_down(TW // 2, _LANE))
            else:
                break

        num_rb = (NC + TR - 1) // TR
        num_cb = (M + TW - 1) // TW

        tile_bytes = TR * TW * max(itemsize, 4)
        vmem_limit = int(min(56 << 20, max(32 << 20, 6 * tile_bytes)))

        row_col = lambda r, w: (r, 0)
        tile = lambda r, w: (r, w)

        out2 = pl.pallas_call(
            _cdl_kernel,
            out_shape=jax.ShapeDtypeStruct((NC, M), x.dtype),
            grid=(num_rb, num_cb),
            in_specs=[
                pl.BlockSpec(memory_space=pltpu.MemorySpace.SMEM),  # flag (1,)
                pl.BlockSpec((TR, 1), row_col),                     # slope col
                pl.BlockSpec((TR, 1), row_col),                     # offset col
                pl.BlockSpec((TR, 1), row_col),                     # power col
                pl.BlockSpec((TR, TW), tile),                       # x tile
            ],
            out_specs=pl.BlockSpec((TR, TW), tile),
            compiler_params=pltpu.CompilerParams(
                dimension_semantics=("parallel", "parallel"),
                vmem_limit_bytes=vmem_limit),
        )(flag, s_row, b_row, p_row, x2)
        return out2.reshape(N, C, H, W)

    # ---------- tiny-image fallback: fold C into the lane axis ----------
    L = C * M
    x2 = x.reshape(N, L)
    s_lane = jnp.broadcast_to(s_c[:, None], (C, M)).reshape(1, L)
    b_lane = jnp.broadcast_to(b_c[:, None], (C, M)).reshape(1, L)
    p_lane = jnp.broadcast_to(p_c[:, None], (C, M)).reshape(1, L)

    rows = max(1, elems_budget // L)
    if N <= sub or N <= rows:
        TRn = N
    else:
        TRn = max(sub, _round_down(rows, sub))

    tries = 0
    while (want_split and (N + TRn - 1) // TRn < _MIN_GRID_STEPS
           and TRn >= 2 * sub and tries < 8):
        TRn = max(sub, _round_down(TRn // 2, sub))
        tries += 1

    num_rb = (N + TRn - 1) // TRn
    tile_bytes = TRn * L * max(itemsize, 4)
    vmem_limit = int(min(56 << 20, max(32 << 20, 6 * tile_bytes)))

    lane_row = lambda r: (0, 0)
    row_blk = lambda r: (r, 0)

    out2 = pl.pallas_call(
        _cdl_kernel,
        out_shape=jax.ShapeDtypeStruct((N, L), x.dtype),
        grid=(num_rb,),
        in_specs=[
            pl.BlockSpec(memory_space=pltpu.MemorySpace.SMEM),      # flag (1,)
            pl.BlockSpec((1, L), lane_row),                         # slope row
            pl.BlockSpec((1, L), lane_row),                         # offset row
            pl.BlockSpec((1, L), lane_row),                         # power row
            pl.BlockSpec((TRn, L), row_blk),                        # x tile
        ],
        out_specs=pl.BlockSpec((TRn, L), row_blk),
        compiler_params=pltpu.CompilerParams(
            dimension_semantics=("parallel",),
            vmem_limit_bytes=vmem_limit),
    )(flag, s_lane, b_lane, p_lane, x2)
    return out2.reshape(N, C, H, W)


if __name__ == "__main__":
    C = 3

    def reference(x, slope, offset, power):
        y = x * jnp.maximum(slope, 1e-8) + offset
        y = jnp.maximum(y, 1e-11)
        return jnp.power(y, power)

    key = jax.random.PRNGKey(0)
    k1, k2 = jax.random.split(key)

    # Case 1: module default init (slope=1, offset=0, power=1) -> fast path.
    x = jax.random.normal(k1, (2, C, 16, 16), dtype=jnp.float32)
    slope0 = jnp.ones((1, C, 1, 1), jnp.float32)
    offset0 = jnp.zeros((1, C, 1, 1), jnp.float32)
    power0 = jnp.ones((1, C, 1, 1), jnp.float32)
    out0 = jax.block_until_ready(cdl_forward(x, slope0, offset0, power0))
    ref0 = reference(x, slope0, offset0, power0)
    assert out0.shape == x.shape and out0.dtype == x.dtype
    assert jnp.allclose(out0, ref0, rtol=1e-5, atol=1e-6), "mismatch (default params)"

    # Case 2: perturbed per-channel params -> clamp + exp/log pow path.
    ar = jnp.arange(C, dtype=jnp.float32).reshape(1, C, 1, 1)
    slope1 = 1.0 + 0.10 * ar
    offset1 = 0.05 * ar
    power1 = 1.0 + 0.20 * ar
    out1 = jax.block_until_ready(cdl_forward(x, slope1, offset1, power1))
    ref1 = reference(x, slope1, offset1, power1)
    assert out1.shape == x.shape and out1.dtype == x.dtype
    assert jnp.allclose(out1, ref1, rtol=1e-5, atol=1e-6), "mismatch (perturbed params)"

    # Case 3: tiny spatial extent (H*W < 128) -> lane-folded fallback layout.
    xs = jax.random.normal(k2, (2, C, 8, 8), dtype=jnp.float32)
    out2 = jax.block_until_ready(cdl_forward(xs, slope1, offset1, power1))
    ref2 = reference(xs, slope1, offset1, power1)
    assert out2.shape == xs.shape and out2.dtype == xs.dtype
    assert jnp.allclose(out2, ref2, rtol=1e-5, atol=1e-6), "mismatch (tiny-image path)"

    print("KERNEL_OK")
</pallas_src>

<mosaic_0001>
module attributes {stable_mosaic.version = 11 : i64} {
  func.func @_cdl_kernel(%arg0: i32, %arg1: i32, %arg2: memref<1xi32, #tpu.memory_space<smem>>, %arg3: memref<6x1xf32, #tpu.memory_space<vmem>>, %arg4: memref<6x1xf32, #tpu.memory_space<vmem>>, %arg5: memref<6x1xf32, #tpu.memory_space<vmem>>, %arg6: memref<6x256xf32, #tpu.memory_space<vmem>>, %arg7: memref<6x256xf32, #tpu.memory_space<vmem>>) attributes {dimension_semantics = [#tpu.dimension_semantics<parallel>, #tpu.dimension_semantics<parallel>], iteration_bounds = array<i64: 1, 1>, scalar_prefetch = 0 : i64, scratch_operands = 0 : i64, tpu.core_type = #tpu.core_type<tc>, window_params = [{transform_indices = @transform_0, window_bounds = array<i64: 1>}, {transform_indices = @transform_1, window_bounds = array<i64: 6, 1>}, {transform_indices = @transform_2, window_bounds = array<i64: 6, 1>}, {transform_indices = @transform_3, window_bounds = array<i64: 6, 1>}, {transform_indices = @transform_4, window_bounds = array<i64: 6, 256>}, {transform_indices = @transform_5, window_bounds = array<i64: 6, 256>}]} {
    %c0 = arith.constant 0 : index
    %c0_0 = arith.constant 0 : index
    %0 = vector.load %arg3[%c0, %c0_0] : memref<6x1xf32, #tpu.memory_space<vmem>>, vector<6x1xf32>
    %c0_1 = arith.constant 0 : index
    %c0_2 = arith.constant 0 : index
    %1 = vector.load %arg4[%c0_1, %c0_2] : memref<6x1xf32, #tpu.memory_space<vmem>>, vector<6x1xf32>
    %c0_3 = arith.constant 0 : index
    %c0_4 = arith.constant 0 : index
    %2 = vector.load %arg5[%c0_3, %c0_4] : memref<6x1xf32, #tpu.memory_space<vmem>>, vector<6x1xf32>
    %c0_5 = arith.constant 0 : index
    %c0_6 = arith.constant 0 : index
    %3 = vector.load %arg6[%c0_5, %c0_6] : memref<6x256xf32, #tpu.memory_space<vmem>>, vector<6x256xf32>
    %4 = vector.broadcast %0 : vector<6x1xf32> to vector<6x256xf32>
    %5 = arith.mulf %3, %4 : vector<6x256xf32>
    %6 = vector.broadcast %1 : vector<6x1xf32> to vector<6x256xf32>
    %7 = arith.addf %5, %6 : vector<6x256xf32>
    %cst = arith.constant 9.99999996E-12 : f32
    %8 = vector.broadcast %cst : f32 to vector<6x256xf32>
    %9 = arith.maximumf %7, %8 : vector<6x256xf32>
    %c0_7 = arith.constant 0 : index
    %10 = memref.load %arg2[%c0_7] : memref<1xi32, #tpu.memory_space<smem>>
    %c1_i32 = arith.constant 1 : i32
    %11 = arith.cmpi eq, %10, %c1_i32 : i32
    %12 = arith.extui %11 : i1 to i32
    %c0_i32 = arith.constant 0 : i32
    %13 = arith.cmpi ne, %12, %c0_i32 : i32
    scf.if %13 {
      %c0_9 = arith.constant 0 : index
      %c0_10 = arith.constant 0 : index
      %17 = vector.load %arg7[%c0_9, %c0_10] : memref<6x256xf32, #tpu.memory_space<vmem>>, vector<6x256xf32>
      tpu.vector_store %arg7[%c0_9, %c0_10], %9 {strides = array<i32>} : memref<6x256xf32, #tpu.memory_space<vmem>>, vector<6x256xf32>,
    } else {
    }
    %true = arith.constant true
    %14 = arith.xori %11, %true : i1
    %15 = arith.extui %14 : i1 to i32
    %c0_i32_8 = arith.constant 0 : i32
    %16 = arith.cmpi ne, %15, %c0_i32_8 : i32
    scf.if %16 {
      %17 = math.log %9 : vector<6x256xf32>
      %18 = vector.broadcast %2 : vector<6x1xf32> to vector<6x256xf32>
      %19 = arith.mulf %18, %17 : vector<6x256xf32>
      %20 = math.exp %19 : vector<6x256xf32>
      %c0_9 = arith.constant 0 : index
      %c0_10 = arith.constant 0 : index
      %21 = vector.load %arg7[%c0_9, %c0_10] : memref<6x256xf32, #tpu.memory_space<vmem>>, vector<6x256xf32>
      tpu.vector_store %arg7[%c0_9, %c0_10], %20 {strides = array<i32>} : memref<6x256xf32, #tpu.memory_space<vmem>>, vector<6x256xf32>,
    } else {
    }
    return
  }
  func.func @transform_0(%arg0: i32, %arg1: i32) -> i32 {
    %c0_i32 = arith.constant 0 : i32
    %c0_i32_0 = arith.constant 0 : i32
    return %c0_i32 : i32
  }
  func.func @transform_1(%arg0: i32, %arg1: i32) -> (i32, i32) {
    %c0_i32 = arith.constant 0 : i32
    %c0_i32_0 = arith.constant 0 : i32
    return %arg0, %c0_i32 : i32, i32
  }
  func.func @transform_2(%arg0: i32, %arg1: i32) -> (i32, i32) {
    %c0_i32 = arith.constant 0 : i32
    %c0_i32_0 = arith.constant 0 : i32
    return %arg0, %c0_i32 : i32, i32
  }
  func.func @transform_3(%arg0: i32, %arg1: i32) -> (i32, i32) {
    %c0_i32 = arith.constant 0 : i32
    %c0_i32_0 = arith.constant 0 : i32
    return %arg0, %c0_i32 : i32, i32
  }
  func.func @transform_4(%arg0: i32, %arg1: i32) -> (i32, i32) {
    %c0_i32 = arith.constant 0 : i32
    return %arg0, %arg1 : i32, i32
  }
  func.func @transform_5(%arg0: i32, %arg1: i32) -> (i32, i32) {
    %c0_i32 = arith.constant 0 : i32
    return %arg0, %arg1 : i32, i32
  }
}

</mosaic_0001>

<llo_original>
// kernel: tpu_custom_call.1
$region0: #{tpu_custom_call.1}
  #allocation0 [shape = 'u32[]', space=smem, size = 0x4, offset = 0x4, fixed_abs, tag = 'smem constant byte address 0x4 - core index']
  #allocation1 [shape = 'u32[72,128]{1,0:T(1,128)}', space=vmem, size = 0x9000, scoped, tag = 'internal scratch']
  #allocation2 [shape = 's32[1]{0:T(128)S(6)}', space=smem, size = 0x200, scoped, tag = 'scoped memory for tpu_custom_call.1']
  %s0 = inlined_call_operand.<no memory space> [shape: s32[1], index: 0, kind: input, shape index: {}]
  %s1 = inlined_call_operand.vmem [shape: f32[6,1], index: 1, kind: input, shape index: {}]
  %s2 = inlined_call_operand.vmem [shape: f32[6,1], index: 2, kind: input, shape index: {}]
  %s3 = inlined_call_operand.vmem [shape: f32[6,1], index: 3, kind: input, shape index: {}]
  %s4 = inlined_call_operand.vmem [shape: f32[6,256], index: 4, kind: input, shape index: {}]
  %s5 = inlined_call_operand.hbm [shape: f32[6,256], index: 5, kind: output, shape index: {}]
  %s6 = sld [smem:[#allocation0]]
  $region38: #{tpu_custom_call.1} parent=0
    _
  %s8 = ssub.s32 1, %s6
  %s9 = scalar_select 0, %s8, %s6
  %10 = sst [smem:[#allocation2]] %s0
  $region1: #{tpu_custom_call.1} parent=0
    #allocation3 [shape = 'u8[8192]{0}', space=vmem, size = 0x2000, scoped, tag = 'output window, operand 0, single buffered']
    #allocation4 [shape = 's32[1]{0}', space=sflag, size = 0x4, scoped, tag = 'scoped memory for tpu_custom_call.1']
    %11 = vsyncpa [#allocation4], 0
    // Predicated region
    $region2: #{tpu_custom_call.1} parent=1 // pred_check
      _
    $region3: #{tpu_custom_call.1} parent=1 // pred_check_branch
      %13 = sbr.rel (0) target = $region5
    $region4: #{tpu_custom_call.1} parent=1 // pred_region
      _
    $region5: #{tpu_custom_call.1} parent=1 // pred_fallthru
      _
    // Predicated region
    $region6: #{tpu_custom_call.1} parent=1 // pred_check
      _
    $region7: #{tpu_custom_call.1} parent=1 // pred_check_branch
      %15 = sbr.rel (0) target = $region9
    $region8: #{tpu_custom_call.1} parent=1 // pred_region
      _
    $region9: #{tpu_custom_call.1} parent=1 // pred_fallthru
      _
    // Predicated region
    $region10: #{tpu_custom_call.1} parent=1 // pred_check
      _
    $region11: #{tpu_custom_call.1} parent=1 // pred_check_branch
      %17 = sbr.rel (0) target = $region13
    $region12: #{tpu_custom_call.1} parent=1 // pred_region
      _
    $region13: #{tpu_custom_call.1} parent=1 // pred_fallthru
      _
    // Predicated region
    $region14: #{tpu_custom_call.1} parent=1 // pred_check
      _
    $region15: #{tpu_custom_call.1} parent=1 // pred_check_branch
      %19 = sbr.rel (0) target = $region17
    $region16: #{tpu_custom_call.1} parent=1 // pred_region
      _
    $region17: #{tpu_custom_call.1} parent=1 // pred_fallthru
      _
    // Predicated region
    $region18: #{tpu_custom_call.1} parent=1 // pred_check
      _
    $region19: #{tpu_custom_call.1} parent=1 // pred_check_branch
      %21 = sbr.rel (0) target = $region21
    $region20: #{tpu_custom_call.1} parent=1 // pred_region
      _
    $region21: #{tpu_custom_call.1} parent=1 // pred_fallthru
      _
    %v22 = vld [vmem:[%s1] sm:$0x3f]
    %v23 = vld [vmem:[%s2] sm:$0x3f]
    %v24 = vld [vmem:[%s3] sm:$0x3f]
    %v25 = vld [vmem:[%s4] sm:$0x3f]
    %v26 = vld [vmem:[%s4 + $0x8] sm:$0x3f]
    %28 = vset.pattern.permute.xlu0 0
    %29 = vperm.xlu0 %28, %v22
    %v30 = vpop.permute.xlu0 %29
    %v32 = vmul.f32 %v25, %v30
    %v33 = vmul.f32 %v26, %v30
    %35 = vset.pattern.permute.xlu0 0
    %36 = vperm.xlu0 %35, %v23
    %v37 = vpop.permute.xlu0 %36
    %v39 = vadd.f32 %v32, %v37
    %v40 = vadd.f32 %v33, %v37
    %v41 = vmax.f32 %v39, 1e-11
    %v42 = vmax.f32 %v40, 1e-11
    %s43 = sld [smem:[#allocation2]]
    %p44 = scmp.eq.s32.totalorder %s43, 1
    // Predicated region
    $region22: #{tpu_custom_call.1} parent=1 // pred_check
      %p45 = pneg %p44
    $region23: #{tpu_custom_call.1} parent=1 // pred_check_branch
      %47 = sbr.rel (%p45) target = $region25
    $region24: #{tpu_custom_call.1} parent=1 // pred_region
      %48 = vst [vmem:[#allocation3] sm:$0x3f] %v41
      %49 = vst [vmem:[#allocation3 + $0x8] sm:$0x3f] %v42
    $region25: #{tpu_custom_call.1} parent=1 // pred_fallthru
      _
    %p50 = scmp.ne.s32.totalorder %s43, 1
    // Predicated region
    $region26: #{tpu_custom_call.1} parent=1 // pred_check
      %p51 = pneg %p50
    $region27: #{tpu_custom_call.1} parent=1 // pred_check_branch
      %53 = sbr.rel (%p51) target = $region29
    $region28: #{tpu_custom_call.1} parent=1 // pred_region
      %v54 = vlog2.pop %v41
      %v55 = vmul.f32 %v54, 0.6931472
      %v56 = vlog2.pop %v42
      %v57 = vmul.f32 %v56, 0.6931472
      %59 = vset.pattern.permute.xlu0 0
      %60 = vperm.xlu0 %59, %v24
      %v61 = vpop.permute.xlu0 %60
      %v63 = vmul.f32 %v61, %v55
      %v64 = vmul.f32 %v61, %v57
      %v65 = vmul.f32 %v63, 1.442695
      %v66 = vpow.pop %v65
      %v67 = vmul.f32 %v64, 1.442695
      %v68 = vpow.pop %v67
      %69 = vst [vmem:[#allocation3] sm:$0x3f] %v66
      %70 = vst [vmem:[#allocation3 + $0x8] sm:$0x3f] %v68
    $region29: #{tpu_custom_call.1} parent=1 // pred_fallthru
      _
    // Predicated region
    $region30: #{tpu_custom_call.1} parent=1 // pred_check
      _
    $region31: #{tpu_custom_call.1} parent=1 // pred_check_branch
      %72 = sbr.rel (0) target = $region33
    $region32: #{tpu_custom_call.1} parent=1 // pred_region
      %74 = vsyncadd [#allocation4], 0
      %s76 = sshll.u32 [#allocation3], 4
      %s77 = int_to_ptr.vmem [resolvable:$true] %s76
      %s78 = sshll.u32 %s5, 4
      %s79 = int_to_ptr.hbm [resolvable:$true] %s78
      %81 = dma.vmem_to_hbm [thread:$0]  %s77, 256, %s79, [#allocation4]
    $region33: #{tpu_custom_call.1} parent=1 // pred_fallthru
      _
    // Predicated region
    $region34: #{tpu_custom_call.1} parent=1 // pred_check
      _
    $region35: #{tpu_custom_call.1} parent=1 // pred_check_branch
      %83 = sbr.rel (0) target = $region37
    $region36: #{tpu_custom_call.1} parent=1 // pred_region
      %85 = dma.done [#allocation4], 256
    $region37: #{tpu_custom_call.1} parent=1 // pred_fallthru
      _
    %86 = vsyncpa [#allocation4], 1

</llo_original>
